<compile_context>
chip_gen: v5e
topology: v5e:2x2
jax: 0.10.0
libtpu: 0.0.40
codegen_flags: <defaults>
</compile_context>

<pallas_src>
import functools

import numpy as np

import jax
import jax.numpy as jnp
from jax.experimental import pallas as pl
from jax.experimental.pallas import tpu as pltpu

_LANES = 128


def _round_up(x, m):
    return ((x + m - 1) // m) * m


def _conv_relu_kernel(xf_ref, w_ref, b_ref, o_ref, *, Nb, H_out, K,
                      in_lanes, out_lanes):
    """One batch block per grid step.

    xf_ref : (Nb, Hp, in_lanes)        zero-padded rows, W & C_in merged on lanes
    w_ref  : (K, in_lanes, out_lanes)  per-kh banded weight matrices
    b_ref  : (1, out_lanes)            bias tiled across W_out (lane-dense)
    o_ref  : (Nb, H_out, out_lanes)    output, W_out & C_out merged on lanes
    """
    m = Nb * H_out
    # Unrolled accumulation over the K vertical taps: no lane concat, no
    # (m, K*L) slab -- a single f32 accumulator and K MXU contractions.
    acc = jnp.dot(xf_ref[:, 0:H_out, :].reshape(m, in_lanes), w_ref[0],
                  preferred_element_type=jnp.float32)
    for kh in range(1, K):
        acc = acc + jnp.dot(xf_ref[:, kh:kh + H_out, :].reshape(m, in_lanes),
                            w_ref[kh], preferred_element_type=jnp.float32)
    acc = jnp.maximum(acc + b_ref[...], 0.0)          # bias + ReLU, lane-dense
    o_ref[...] = acc.reshape(Nb, H_out, out_lanes).astype(o_ref.dtype)


def _prep_weights(weight, bias, *, K, C_in, C_out, W_out, L, WCo, WCo_pad,
                  mxu_dtype):
    """OIHW (C_out, C_in, K, K) -> per-kh banded matrices (K, L, WCo_pad) and a
    lane-dense bias tile.  Runs ONCE at init (numpy), never per forward.

    Row index  wp*C_in + ci  of w[kh] multiplies padded-input pixel (h+kh, wp, ci);
    column index w*C_out + co produces output pixel (h, w, co).
    """
    w_np = np.asarray(jax.device_get(weight), np.float32)
    b_np = np.asarray(jax.device_get(bias), np.float32)
    w_hwio = np.transpose(w_np, (2, 3, 1, 0)).reshape(K, K * C_in, C_out)
    w_rows = np.zeros((K, L, WCo_pad), np.float32)
    for w in range(W_out):
        w_rows[:, w * C_in:(w + K) * C_in, w * C_out:(w + 1) * C_out] = w_hwio
    b_tile = np.zeros((1, WCo_pad), np.float32)
    b_tile[0, :WCo] = np.tile(b_np, W_out)
    return jnp.asarray(w_rows, dtype=mxu_dtype), jnp.asarray(b_tile,
                                                             dtype=jnp.float32)


def make_basic_block(weight, bias, *, input_shape, ksize=3, stride=1, pad=1,
                     batch_block=None, compute_dtype=None):
    """Returns forward(x_nchw) computing Conv2d(ksize, stride=1, pad) + ReLU.

    weight: (C_out, C_in, K, K) OIHW; bias: (C_out,); input_shape: (N,C,H,W).
    All weight reshaping is done here, once, at init time.
    """
    if stride != 1:
        # TODO(synk): stride != 1 path not implemented (module default is 1).
        raise NotImplementedError("Pallas BasicBlock supports stride=1 only")
    N, C_in, H, W = input_shape
    C_out = weight.shape[0]
    K = ksize
    H_out = H + 2 * pad - K + 1
    W_out = W + 2 * pad - K + 1
    assert H_out > 0 and W_out > 0, "invalid (ksize, pad) for this input"
    Hp, Wp = H + 2 * pad, W + 2 * pad
    L = _round_up(Wp * C_in, _LANES)          # lane-padded input row width
    WCo = W_out * C_out
    WCo_pad = _round_up(WCo, _LANES)          # lane-padded output row width

    if batch_block is None:
        # Maximise per-step matmul M = Nb*H_out (MXU occupancy), but keep at
        # least 2 grid steps so the "parallel" axis spreads over v7x's 2 TCs.
        target_nb = max(1, -(-256 // H_out))
        batch_block = max(1, min(target_nb, N // 2)) if N >= 2 else 1
        while N % batch_block:
            batch_block -= 1
    assert N % batch_block == 0, "batch_block must divide N"
    Nb = batch_block
    lane_pad = L - Wp * C_in

    mxu_dtype = jnp.float32 if compute_dtype is None else compute_dtype

    w_rows, b_tile = _prep_weights(weight, bias, K=K, C_in=C_in, C_out=C_out,
                                   W_out=W_out, L=L, WCo=WCo, WCo_pad=WCo_pad,
                                   mxu_dtype=mxu_dtype)

    kernel = functools.partial(_conv_relu_kernel, Nb=Nb, H_out=H_out, K=K,
                               in_lanes=L, out_lanes=WCo_pad)

    @jax.jit
    def forward(x_nchw):
        assert x_nchw.shape == (N, C_in, H, W)
        out_dtype = x_nchw.dtype

        # --- minimal wrapper glue: one transpose + one pad (lane pad folded
        # into the spatial W pad when possible), then lane-dense rows.
        x_nhwc = jnp.transpose(x_nchw, (0, 2, 3, 1))
        if lane_pad == 0:
            xf = jnp.pad(x_nhwc, ((0, 0), (pad, pad), (pad, pad), (0, 0)))
            xf = xf.reshape(N, Hp, L)
        elif lane_pad % C_in == 0:
            xf = jnp.pad(x_nhwc, ((0, 0), (pad, pad),
                                  (pad, pad + lane_pad // C_in), (0, 0)))
            xf = xf.reshape(N, Hp, L)
        else:
            xf = jnp.pad(x_nhwc, ((0, 0), (pad, pad), (pad, pad), (0, 0)))
            xf = xf.reshape(N, Hp, Wp * C_in)
            xf = jnp.pad(xf, ((0, 0), (0, 0), (0, lane_pad)))
        xf = xf.astype(mxu_dtype)

        out_flat = pl.pallas_call(
            kernel,
            out_shape=jax.ShapeDtypeStruct((N, H_out, WCo_pad), out_dtype),
            grid_spec=pltpu.PrefetchScalarGridSpec(
                num_scalar_prefetch=0,
                grid=(N // Nb,),
                in_specs=[
                    pl.BlockSpec((Nb, Hp, L), lambda n: (n, 0, 0)),
                    pl.BlockSpec((K, L, WCo_pad), lambda n: (0, 0, 0)),
                    pl.BlockSpec((1, WCo_pad), lambda n: (0, 0)),
                ],
                out_specs=pl.BlockSpec((Nb, H_out, WCo_pad),
                                       lambda n: (n, 0, 0)),
            ),
            compiler_params=pltpu.CompilerParams(
                dimension_semantics=("parallel",),
                vmem_limit_bytes=32 * 1024 * 1024,
            ),
        )(xf, w_rows, b_tile)

        out = out_flat[..., :WCo] if WCo_pad != WCo else out_flat
        # Back to NCHW to match the PyTorch module's convention.
        return jnp.transpose(out.reshape(N, H_out, W_out, C_out), (0, 3, 1, 2))

    return forward


def _reference(x_nchw, weight, bias, pad=1):
    """Plain-JAX reference (correctness check only)."""
    out = jax.lax.conv_general_dilated(
        x_nchw, weight, window_strides=(1, 1),
        padding=((pad, pad), (pad, pad)),
        dimension_numbers=("NCHW", "OIHW", "NCHW"))
    return jnp.maximum(out + bias[None, :, None, None], 0.0)


if __name__ == "__main__":
    # Small shapes consistent with the module: N=2, Cin=4, H=W=16, Cout=8.
    N, C_in, H, W = 2, 4, 16, 16
    C_out, K = 8, 3

    key = jax.random.PRNGKey(0)
    kx, kw, kb = jax.random.split(key, 3)
    x = jax.random.normal(kx, (N, C_in, H, W), dtype=jnp.float32)
    fan_in = C_in * K * K
    weight = jax.random.normal(kw, (C_out, C_in, K, K),
                               jnp.float32) / jnp.sqrt(fan_in)
    bias = jax.random.normal(kb, (C_out,), jnp.float32) * 0.1

    ref = jax.block_until_ready(_reference(x, weight, bias, pad=1))

    # f32 MXU-operand path: strict check against the reference.
    fwd = make_basic_block(weight, bias, input_shape=x.shape, ksize=K, pad=1)
    out = jax.block_until_ready(fwd(x))
    assert out.shape == (N, C_out, H, W)
    assert jnp.allclose(out, ref, atol=1e-4, rtol=1e-4), "f32 mismatch vs ref"

    # bf16 MXU-operand path (recommended perf config for v5e/v6e/v7x):
    # f32 accumulation, so only operand-rounding error — loose tolerance.
    fwd_bf16 = make_basic_block(weight, bias, input_shape=x.shape, ksize=K,
                                pad=1, compute_dtype=jnp.bfloat16)
    out_bf16 = jax.block_until_ready(fwd_bf16(x))
    assert out_bf16.shape == (N, C_out, H, W)
    assert jnp.allclose(out_bf16, ref, atol=5e-2, rtol=5e-2), "bf16 mismatch"

    print("KERNEL_OK")
</pallas_src>

<mosaic_0001>
module attributes {stable_mosaic.version = 11 : i64} {
  func.func @_conv_relu_kernel(%arg0: i32, %arg1: memref<1x18x128xf32, #tpu.memory_space<vmem>>, %arg2: memref<3x128x128xf32, #tpu.memory_space<vmem>>, %arg3: memref<1x128xf32, #tpu.memory_space<vmem>>, %arg4: memref<1x16x128xf32, #tpu.memory_space<vmem>>) attributes {dimension_semantics = [#tpu.dimension_semantics<parallel>], iteration_bounds = array<i64: 2>, scalar_prefetch = 0 : i64, scratch_operands = 0 : i64, tpu.core_type = #tpu.core_type<tc>, window_params = [{transform_indices = @transform_0, window_bounds = array<i64: 1, 18, 128>}, {pipeline_mode = #tpu.pipeline_mode<synchronous>, transform_indices = @transform_1, window_bounds = array<i64: 3, 128, 128>}, {pipeline_mode = #tpu.pipeline_mode<synchronous>, transform_indices = @transform_2, window_bounds = array<i64: 1, 128>}, {transform_indices = @transform_3, window_bounds = array<i64: 1, 16, 128>}]} {
    %c0 = arith.constant 0 : index
    %c0_0 = arith.constant 0 : index
    %c0_1 = arith.constant 0 : index
    %0 = vector.load %arg1[%c0, %c0_0, %c0_1] : memref<1x18x128xf32, #tpu.memory_space<vmem>>, vector<1x16x128xf32>
    %1 = vector.shape_cast %0 : vector<1x16x128xf32> to vector<16x128xf32>
    %c0_2 = arith.constant 0 : index
    %c0_3 = arith.constant 0 : index
    %c0_4 = arith.constant 0 : index
    %2 = vector.load %arg2[%c0_2, %c0_3, %c0_4] : memref<3x128x128xf32, #tpu.memory_space<vmem>>, vector<1x128x128xf32>
    %3 = vector.shape_cast %2 : vector<1x128x128xf32> to vector<128x128xf32>
    %cst = arith.constant dense<0.000000e+00> : vector<16x128xf32>
    %4 = tpu.matmul %1, %3, %cst {dimension_numbers = #tpu.dot_dimension_numbers<[1], [0], [0], [1], [0, 0, 1, 1], [], []>} : vector<16x128xf32>, vector<128x128xf32>, vector<16x128xf32> -> vector<16x128xf32>
    %c0_5 = arith.constant 0 : index
    %c1 = arith.constant 1 : index
    %c0_6 = arith.constant 0 : index
    %5 = vector.load %arg1[%c0_5, %c1, %c0_6] : memref<1x18x128xf32, #tpu.memory_space<vmem>>, vector<1x16x128xf32>
    %6 = vector.shape_cast %5 : vector<1x16x128xf32> to vector<16x128xf32>
    %c1_7 = arith.constant 1 : index
    %c0_8 = arith.constant 0 : index
    %c0_9 = arith.constant 0 : index
    %7 = vector.load %arg2[%c1_7, %c0_8, %c0_9] : memref<3x128x128xf32, #tpu.memory_space<vmem>>, vector<1x128x128xf32>
    %8 = vector.shape_cast %7 : vector<1x128x128xf32> to vector<128x128xf32>
    %cst_10 = arith.constant dense<0.000000e+00> : vector<16x128xf32>
    %9 = tpu.matmul %6, %8, %cst_10 {dimension_numbers = #tpu.dot_dimension_numbers<[1], [0], [0], [1], [0, 0, 1, 1], [], []>} : vector<16x128xf32>, vector<128x128xf32>, vector<16x128xf32> -> vector<16x128xf32>
    %10 = arith.addf %4, %9 : vector<16x128xf32>
    %c0_11 = arith.constant 0 : index
    %c2 = arith.constant 2 : index
    %c0_12 = arith.constant 0 : index
    %11 = vector.load %arg1[%c0_11, %c2, %c0_12] : memref<1x18x128xf32, #tpu.memory_space<vmem>>, vector<1x16x128xf32>
    %12 = vector.shape_cast %11 : vector<1x16x128xf32> to vector<16x128xf32>
    %c2_13 = arith.constant 2 : index
    %c0_14 = arith.constant 0 : index
    %c0_15 = arith.constant 0 : index
    %13 = vector.load %arg2[%c2_13, %c0_14, %c0_15] : memref<3x128x128xf32, #tpu.memory_space<vmem>>, vector<1x128x128xf32>
    %14 = vector.shape_cast %13 : vector<1x128x128xf32> to vector<128x128xf32>
    %cst_16 = arith.constant dense<0.000000e+00> : vector<16x128xf32>
    %15 = tpu.matmul %12, %14, %cst_16 {dimension_numbers = #tpu.dot_dimension_numbers<[1], [0], [0], [1], [0, 0, 1, 1], [], []>} : vector<16x128xf32>, vector<128x128xf32>, vector<16x128xf32> -> vector<16x128xf32>
    %16 = arith.addf %10, %15 : vector<16x128xf32>
    %c0_17 = arith.constant 0 : index
    %c0_18 = arith.constant 0 : index
    %17 = vector.load %arg3[%c0_17, %c0_18] : memref<1x128xf32, #tpu.memory_space<vmem>>, vector<1x128xf32>
    %18 = vector.broadcast %17 : vector<1x128xf32> to vector<16x128xf32>
    %19 = arith.addf %16, %18 : vector<16x128xf32>
    %cst_19 = arith.constant 0.000000e+00 : f32
    %20 = vector.broadcast %cst_19 : f32 to vector<16x128xf32>
    %21 = arith.maximumf %19, %20 : vector<16x128xf32>
    %22 = vector.shape_cast %21 : vector<16x128xf32> to vector<1x16x128xf32>
    %c0_20 = arith.constant 0 : index
    %c0_21 = arith.constant 0 : index
    %c0_22 = arith.constant 0 : index
    %23 = vector.load %arg4[%c0_20, %c0_21, %c0_22] : memref<1x16x128xf32, #tpu.memory_space<vmem>>, vector<1x16x128xf32>
    tpu.vector_store %arg4[%c0_20, %c0_21, %c0_22], %22 {strides = array<i32>} : memref<1x16x128xf32, #tpu.memory_space<vmem>>, vector<1x16x128xf32>,
    return
  }
  func.func @transform_0(%arg0: i32) -> (i32, i32, i32) {
    %c0_i32 = arith.constant 0 : i32
    %c0_i32_0 = arith.constant 0 : i32
    %c0_i32_1 = arith.constant 0 : i32
    return %arg0, %c0_i32, %c0_i32_0 : i32, i32, i32
  }
  func.func @transform_1(%arg0: i32) -> (i32, i32, i32) {
    %c0_i32 = arith.constant 0 : i32
    %c0_i32_0 = arith.constant 0 : i32
    %c0_i32_1 = arith.constant 0 : i32
    %c0_i32_2 = arith.constant 0 : i32
    return %c0_i32, %c0_i32_0, %c0_i32_1 : i32, i32, i32
  }
  func.func @transform_2(%arg0: i32) -> (i32, i32) {
    %c0_i32 = arith.constant 0 : i32
    %c0_i32_0 = arith.constant 0 : i32
    %c0_i32_1 = arith.constant 0 : i32
    return %c0_i32, %c0_i32_0 : i32, i32
  }
  func.func @transform_3(%arg0: i32) -> (i32, i32, i32) {
    %c0_i32 = arith.constant 0 : i32
    %c0_i32_0 = arith.constant 0 : i32
    %c0_i32_1 = arith.constant 0 : i32
    return %arg0, %c0_i32, %c0_i32_0 : i32, i32, i32
  }
}

</mosaic_0001>

<llo_original>
// kernel: forward.1
$region0: #{forward.1}
  #allocation0 [shape = 'u32[]', space=smem, size = 0x4, offset = 0x4, fixed_abs, tag = 'smem constant byte address 0x4 - core index']
  #allocation1 [shape = 'u32[72,128]{1,0:T(1,128)}', space=vmem, size = 0x9000, scoped, tag = 'internal scratch']
  %s0 = inlined_call_operand.vmem [shape: f32[2,18,128], index: 0, kind: input, shape index: {}]
  %s1 = inlined_call_operand.vmem [shape: f32[3,128,128], index: 1, kind: input, shape index: {}]
  %s2 = inlined_call_operand.vmem [shape: f32[1,128], index: 2, kind: input, shape index: {}]
  %s3 = inlined_call_operand.vmem [shape: f32[2,16,128], index: 3, kind: output, shape index: {}]
  %s4 = sld [smem:[#allocation0]]
  $region45: #{forward.1} parent=0
    _
  %s6 = ssub.s32 1, %s4
  %s7 = scalar_select 0, %s6, %s4
  loop: start=0, step=1, limit=4
  $region2: #{forward.1} parent=0 // loop_pre_header
    _
  $region3: #{forward.1} parent=0 // loop_header
    %s9 = sphi 0, %s13
    %p10 = scmp.ge.s32.totalorder %s9, 4
    %s19 = sphi 0, %s21
    %s22 = sphi 0, %s19
    %s23 = sphi 0, %s22
    %s39 = sphi 0, %s23
    %s43 = sphi 0, %s43
    %s45 = sphi 0, %s43
    %s46 = sphi 0, %s45
    %s60 = sphi 0, %s46
    %s64 = sphi 0, %s64
    %s66 = sphi 0, %s64
    %s67 = sphi 0, %s66
    %s81 = sphi 0, %s67
    %s87 = sphi 0, %s89
    %s90 = sphi 0, %s87
    %s91 = sphi 0, %s90
    %s107 = sphi 0, %s91
  $region4: #{forward.1} parent=0 // loop_header_branch
    %12 = sbr.rel (%p10) target = $region8
  $region5: #{forward.1} parent=0 // loop_body
    %s14 = ssub.s32 %s9, 1
    %s15 = ssub.s32 %s9, 2
    %s16 = sadd.s32 %s9, 1
    %s17 = ssub.s32 %s9, %s16
    %p18 = scmp.eq.s32.totalorder %s17, 0
    %s20 = sadd.s32 %s19, 1
    %s21 = scalar_select %p18, %s19, %s20
    %p24 = pneg %p18
    %p25 = scmp.eq.s32.totalorder %s9, 1
    %p26 = por %p24, %p25
    %p27 = scmp.ne.s32.totalorder %s19, %s22
    %p28 = scmp.eq.s32.totalorder %s9, 0
    %p29 = por %p27, %p28
    %p30 = scmp.ne.s32.totalorder %s19, %s22
    %p31 = scmp.eq.s32.totalorder %s14, 1
    %p32 = por %p30, %p31
    %p33 = scmp.ne.s32.totalorder %s22, %s23
    %p34 = scmp.eq.s32.totalorder %s14, 0
    %p35 = por %p33, %p34
    %p36 = scmp.ne.s32.totalorder %s22, %s23
    %p37 = scmp.eq.s32.totalorder %s15, 1
    %p38 = por %p36, %p37
    %p40 = scmp.ne.s32.totalorder %s23, %s39
    %p41 = scmp.eq.s32.totalorder %s15, 0
    %p42 = por %p40, %p41
    %s44 = sadd.s32 %s43, 1
    %p47 = scmp.eq.s32.totalorder %s9, 1
    %p48 = scmp.ne.s32.totalorder %s43, %s45
    %p49 = scmp.eq.s32.totalorder %s9, 0
    %p50 = por %p48, %p49
    %p51 = scmp.ne.s32.totalorder %s43, %s45
    %p52 = scmp.eq.s32.totalorder %s14, 1
    %p53 = por %p51, %p52
    %p54 = scmp.ne.s32.totalorder %s45, %s46
    %p55 = scmp.eq.s32.totalorder %s14, 0
    %p56 = por %p54, %p55
    %p57 = scmp.ne.s32.totalorder %s45, %s46
    %p58 = scmp.eq.s32.totalorder %s15, 1
    %p59 = por %p57, %p58
    %p61 = scmp.ne.s32.totalorder %s46, %s60
    %p62 = scmp.eq.s32.totalorder %s15, 0
    %p63 = por %p61, %p62
    %s65 = sadd.s32 %s64, 1
    %p68 = scmp.eq.s32.totalorder %s9, 1
    %p69 = scmp.ne.s32.totalorder %s64, %s66
    %p70 = scmp.eq.s32.totalorder %s9, 0
    %p71 = por %p69, %p70
    %p72 = scmp.ne.s32.totalorder %s64, %s66
    %p73 = scmp.eq.s32.totalorder %s14, 1
    %p74 = por %p72, %p73
    %p75 = scmp.ne.s32.totalorder %s66, %s67
    %p76 = scmp.eq.s32.totalorder %s14, 0
    %p77 = por %p75, %p76
    %p78 = scmp.ne.s32.totalorder %s66, %s67
    %p79 = scmp.eq.s32.totalorder %s15, 1
    %p80 = por %p78, %p79
    %p82 = scmp.ne.s32.totalorder %s67, %s81
    %p83 = scmp.eq.s32.totalorder %s15, 0
    %p84 = por %p82, %p83
    %s85 = ssub.s32 %s9, %s16
    %p86 = scmp.eq.s32.totalorder %s85, 0
    %s88 = sadd.s32 %s87, 1
    %s89 = scalar_select %p86, %s87, %s88
    %p92 = pneg %p86
    %p93 = scmp.eq.s32.totalorder %s9, 1
    %p94 = por %p92, %p93
    %p95 = scmp.ne.s32.totalorder %s87, %s90
    %p96 = scmp.eq.s32.totalorder %s9, 0
    %p97 = por %p95, %p96
    %p98 = scmp.ne.s32.totalorder %s87, %s90
    %p99 = scmp.eq.s32.totalorder %s14, 1
    %p100 = por %p98, %p99
    %p101 = scmp.ne.s32.totalorder %s90, %s91
    %p102 = scmp.eq.s32.totalorder %s14, 0
    %p103 = por %p101, %p102
    %p104 = scmp.ne.s32.totalorder %s90, %s91
    %p105 = scmp.eq.s32.totalorder %s15, 1
    %p106 = por %p104, %p105
    %p108 = scmp.ne.s32.totalorder %s91, %s107
    %p109 = scmp.eq.s32.totalorder %s15, 0
    %p110 = por %p108, %p109
    %p111 = scmp.le.s32.totalorder 1, %s9
    %p112 = scmp.lt.s32.totalorder %s9, 3
    %p113 = pnand %p111, %p112
    %p114 = pneg %p113
    // Predicated region
    $region9: #{forward.1} parent=5 // pred_check
      _
    $region10: #{forward.1} parent=5 // pred_check_branch
      %116 = sbr.rel (%p113) target = $region12
    $region11: #{forward.1} parent=5 // pred_region
      %s117 = ssub.s32 %s9, 1
      // Predicated region
      $region13: #{forward.1} parent=11 // pred_check
        %p118 = pneg %p56
      $region14: #{forward.1} parent=11 // pred_check_branch
        %120 = sbr.rel (%p118) target = $region16
      $region15: #{forward.1} parent=11 // pred_region
        _
      $region16: #{forward.1} parent=11 // pred_fallthru
        _
      // Predicated region
      $region17: #{forward.1} parent=11 // pred_check
        %p121 = pneg %p77
      $region18: #{forward.1} parent=11 // pred_check_branch
        %123 = sbr.rel (%p121) target = $region20
      $region19: #{forward.1} parent=11 // pred_region
        _
      $region20: #{forward.1} parent=11 // pred_fallthru
        _
    $region12: #{forward.1} parent=5 // pred_fallthru
      _
    %p124 = scmp.lt.s32.totalorder %s9, 2
    // Predicated region
    $region21: #{forward.1} parent=5 // pred_check
      %p125 = pneg %p124
    $region22: #{forward.1} parent=5 // pred_check_branch
      %127 = sbr.rel (%p125) target = $region24
    $region23: #{forward.1} parent=5 // pred_region
      // Predicated region
      $region25: #{forward.1} parent=23 // pred_check
        %p128 = pneg %p29
      $region26: #{forward.1} parent=23 // pred_check_branch
        %130 = sbr.rel (%p128) target = $region28
      $region27: #{forward.1} parent=23 // pred_region
        %p131 = scmp.lt.s32.totalorder %s9, 1
        %s132 = scalar_select %p131, %s9, 1
        %s133 = smul.addr %s132, 3
        %s134 = smul.addr %s133, 8
        %s135 = scalar_lea.vmem %s0, %s134
      $region28: #{forward.1} parent=23 // pred_fallthru
        _
    $region24: #{forward.1} parent=5 // pred_fallthru
      _
    %p136 = scmp.le.s32.totalorder 1, %s9
    %p137 = scmp.lt.s32.totalorder %s9, 3
    %p138 = pnand %p136, %p137
    %p139 = pneg %p138
    // Predicated region
    $region29: #{forward.1} parent=5 // pred_check
      _
    $region30: #{forward.1} parent=5 // pred_check_branch
      %141 = sbr.rel (%p138) target = $region32
    $region31: #{forward.1} parent=5 // pred_region
      %s142 = ssub.s32 %s9, 1
      %p143 = scmp.lt.s32.totalorder %s14, 1
      %s144 = scalar_select %p143, %s14, 1
      %s145 = smul.addr %s144, 3
      %s146 = smul.addr %s145, 8
      %s147 = scalar_lea.vmem %s0, %s146
      %p148 = pneg %p35
      %p149 = pneg %p32
      %p150 = pneg %p56
      %p151 = pneg %p53
      %p152 = pneg %p77
      %p153 = pneg %p74
      %p154 = pneg %p103
      %p155 = pneg %p100
      %p156 = scmp.lt.s32.totalorder %s14, 1
      %s157 = scalar_select %p156, %s14, 1
      %s158 = smul.addr %s157, 2
      %s159 = smul.addr %s158, 8
      %s160 = scalar_lea.vmem %s3, %s159
      %p161 = scmp.lt.s32.totalorder %s14, 1
      %s162 = scalar_select %p161, %s14, 1
      %s163 = smul.addr %s162, 3
      %s164 = smul.addr %s163, 8
      %s165 = scalar_lea.vmem %s0, %s164
      %p166 = scmp.lt.s32.totalorder %s14, 1
      %s167 = scalar_select %p166, %s14, 1
      %s168 = smul.addr %s167, 2
      %s169 = smul.addr %s168, 8
      %s170 = scalar_lea.vmem %s3, %s169
      %v171 = vld [vmem:[%s165] sm:$0xff]
      %v172 = vld [vmem:[%s165 + $0x8] sm:$0xff]
      %v173 = vld [vmem:[%s1] sm:$0xff]
      %v174 = vld [vmem:[%s1 + $0x8] sm:$0xff]
      %v175 = vld [vmem:[%s1 + $0x10] sm:$0xff]
      %v176 = vld [vmem:[%s1 + $0x18] sm:$0xff]
      %v177 = vld [vmem:[%s1 + $0x20] sm:$0xff]
      %v178 = vld [vmem:[%s1 + $0x28] sm:$0xff]
      %v179 = vld [vmem:[%s1 + $0x30] sm:$0xff]
      %v180 = vld [vmem:[%s1 + $0x38] sm:$0xff]
      %v181 = vld [vmem:[%s1 + $0x40] sm:$0xff]
      %v182 = vld [vmem:[%s1 + $0x48] sm:$0xff]
      %v183 = vld [vmem:[%s1 + $0x50] sm:$0xff]
      %v184 = vld [vmem:[%s1 + $0x58] sm:$0xff]
      %v185 = vld [vmem:[%s1 + $0x60] sm:$0xff]
      %v186 = vld [vmem:[%s1 + $0x68] sm:$0xff]
      %v187 = vld [vmem:[%s1 + $0x70] sm:$0xff]
      %v188 = vld [vmem:[%s1 + $0x78] sm:$0xff]
      %v189 = vld [vmem:[%s165 + $0x1] sm:$0xff]
      %v190 = vld [vmem:[%s165 + $0x9] sm:$0xff]
      %s191 = scalar_lea.vmem %s1, 128
      %v192 = vld [vmem:[%s191] sm:$0xff]
      %v193 = vld [vmem:[%s191 + $0x8] sm:$0xff]
      %v194 = vld [vmem:[%s191 + $0x10] sm:$0xff]
      %v195 = vld [vmem:[%s191 + $0x18] sm:$0xff]
      %v196 = vld [vmem:[%s191 + $0x20] sm:$0xff]
      %v197 = vld [vmem:[%s191 + $0x28] sm:$0xff]
      %v198 = vld [vmem:[%s191 + $0x30] sm:$0xff]
      %v199 = vld [vmem:[%s191 + $0x38] sm:$0xff]
      %v200 = vld [vmem:[%s191 + $0x40] sm:$0xff]
      %v201 = vld [vmem:[%s191 + $0x48] sm:$0xff]
      %v202 = vld [vmem:[%s191 + $0x50] sm:$0xff]
      %v203 = vld [vmem:[%s191 + $0x58] sm:$0xff]
      %v204 = vld [vmem:[%s191 + $0x60] sm:$0xff]
      %v205 = vld [vmem:[%s191 + $0x68] sm:$0xff]
      %v206 = vld [vmem:[%s191 + $0x70] sm:$0xff]
      %v207 = vld [vmem:[%s191 + $0x78] sm:$0xff]
      %208 = vmatpush.msra.mxu0 %v207
      %209 = vmatpush.msra.mxu0 %v206
      %210 = vmatpush.msra.mxu0 %v205
      %211 = vmatpush.msra.mxu0 %v204
      %212 = vmatpush.msra.mxu0 %v203
      %213 = vmatpush.msra.mxu0 %v202
      %214 = vmatpush.msra.mxu0 %v201
      %215 = vmatpush.msra.mxu0 %v200
      %216 = vmatpush.msra.mxu0 %v199
      %217 = vmatpush.msra.mxu0 %v198
      %218 = vmatpush.msra.mxu0 %v197
      %219 = vmatpush.msra.mxu0 %v196
      %220 = vmatpush.msra.mxu0 %v195
      %221 = vmatpush.msra.mxu0 %v194
      %222 = vmatpush.msra.mxu0 %v193
      %223 = vmatpush.msra.mxu0 %v192
      %224 = vmatmul.f32.gmra.mxu0 %v189
      %v225 = vpop.f32.mrf.mxu0
      %v226 = vadd.f32 0.0, %v225
      %227 = vmatmul.f32.gmra.mxu0 %v190
      %v228 = vpop.f32.mrf.mxu0
      %v229 = vadd.f32 0.0, %v228
      %230 = vdwg.mxu0
      %231 = vmatpush.msra.mxu0 %v188
      %232 = vmatpush.msra.mxu0 %v187
      %233 = vmatpush.msra.mxu0 %v186
      %234 = vmatpush.msra.mxu0 %v185
      %235 = vmatpush.msra.mxu0 %v184
      %236 = vmatpush.msra.mxu0 %v183
      %237 = vmatpush.msra.mxu0 %v182
      %238 = vmatpush.msra.mxu0 %v181
      %239 = vmatpush.msra.mxu0 %v180
      %240 = vmatpush.msra.mxu0 %v179
      %241 = vmatpush.msra.mxu0 %v178
      %242 = vmatpush.msra.mxu0 %v177
      %243 = vmatpush.msra.mxu0 %v176
      %244 = vmatpush.msra.mxu0 %v175
      %245 = vmatpush.msra.mxu0 %v174
      %246 = vmatpush.msra.mxu0 %v173
      %247 = vmatmul.f32.gmra.mxu0 %v171
      %v248 = vpop.f32.mrf.mxu0
      %v249 = vadd.f32 %v226, %v248
      %250 = vmatmul.f32.gmra.mxu0 %v172
      %v251 = vpop.f32.mrf.mxu0
      %v252 = vadd.f32 %v229, %v251
      %253 = vdwg.mxu0
      %v254 = vld [vmem:[%s165 + $0x2] sm:$0xff]
      %v255 = vld [vmem:[%s165 + $0xa] sm:$0xff]
      %s256 = scalar_lea.vmem %s1, 256
      %v257 = vld [vmem:[%s256] sm:$0xff]
      %v258 = vld [vmem:[%s256 + $0x8] sm:$0xff]
      %v259 = vld [vmem:[%s256 + $0x10] sm:$0xff]
      %v260 = vld [vmem:[%s256 + $0x18] sm:$0xff]
      %v261 = vld [vmem:[%s256 + $0x20] sm:$0xff]
      %v262 = vld [vmem:[%s256 + $0x28] sm:$0xff]
      %v263 = vld [vmem:[%s256 + $0x30] sm:$0xff]
      %v264 = vld [vmem:[%s256 + $0x38] sm:$0xff]
      %v265 = vld [vmem:[%s256 + $0x40] sm:$0xff]
      %v266 = vld [vmem:[%s256 + $0x48] sm:$0xff]
      %v267 = vld [vmem:[%s256 + $0x50] sm:$0xff]
      %v268 = vld [vmem:[%s256 + $0x58] sm:$0xff]
      %v269 = vld [vmem:[%s256 + $0x60] sm:$0xff]
      %v270 = vld [vmem:[%s256 + $0x68] sm:$0xff]
      %v271 = vld [vmem:[%s256 + $0x70] sm:$0xff]
      %v272 = vld [vmem:[%s256 + $0x78] sm:$0xff]
      %273 = vmatpush.msra.mxu0 %v272
      %274 = vmatpush.msra.mxu0 %v271
      %275 = vmatpush.msra.mxu0 %v270
      %276 = vmatpush.msra.mxu0 %v269
      %277 = vmatpush.msra.mxu0 %v268
      %278 = vmatpush.msra.mxu0 %v267
      %279 = vmatpush.msra.mxu0 %v266
      %280 = vmatpush.msra.mxu0 %v265
      %281 = vmatpush.msra.mxu0 %v264
      %282 = vmatpush.msra.mxu0 %v263
      %283 = vmatpush.msra.mxu0 %v262
      %284 = vmatpush.msra.mxu0 %v261
      %285 = vmatpush.msra.mxu0 %v260
      %286 = vmatpush.msra.mxu0 %v259
      %287 = vmatpush.msra.mxu0 %v258
      %288 = vmatpush.msra.mxu0 %v257
      %289 = vmatmul.f32.gmra.mxu0 %v254
      %v290 = vpop.f32.mrf.mxu0
      %v291 = vadd.f32 0.0, %v290
      %292 = vmatmul.f32.gmra.mxu0 %v255
      %v293 = vpop.f32.mrf.mxu0
      %v294 = vadd.f32 0.0, %v293
      %295 = vdwg.mxu0
      %v296 = vadd.f32 %v249, %v291
      %v297 = vadd.f32 %v252, %v294
      %v298 = vld [vmem:[%s2] sm:$0x1]
      %v300 = vperm.slane %v298, 0
      %v302 = vadd.f32 %v296, %v300
      %v303 = vadd.f32 %v297, %v300
      %v304 = vmax.f32 %v302, 0.0
      %v305 = vmax.f32 %v303, 0.0
      %306 = vst [vmem:[%s170] sm:$0xff] %v304
      %307 = vst [vmem:[%s170 + $0x8] sm:$0xff] %v305
      %p308 = scmp.lt.s32.totalorder %s14, 1
      %s309 = scalar_select %p308, %s14, 1
      %s310 = smul.addr %s309, 2
      %s311 = smul.addr %s310, 8
      %s312 = scalar_lea.vmem %s3, %s311
      // Predicated region
      $region33: #{forward.1} parent=31 // pred_check
        %p313 = pneg %p100
      $region34: #{forward.1} parent=31 // pred_check_branch
        %315 = sbr.rel (%p313) target = $region36
      $region35: #{forward.1} parent=31 // pred_region
        _
      $region36: #{forward.1} parent=31 // pred_fallthru
        _
    $region32: #{forward.1} parent=5 // pred_fallthru
      _
    %p316 = scmp.le.s32.totalorder 2, %s9
    // Predicated region
    $region37: #{forward.1} parent=5 // pred_check
      %p317 = pneg %p316
    $region38: #{forward.1} parent=5 // pred_check_branch
      %319 = sbr.rel (%p317) target = $region40
    $region39: #{forward.1} parent=5 // pred_region
      %s320 = ssub.s32 %s9, 2
      // Predicated region
      $region41: #{forward.1} parent=39 // pred_check
        %p321 = pneg %p106
      $region42: #{forward.1} parent=39 // pred_check_branch
        %323 = sbr.rel (%p321) target = $region44
      $region43: #{forward.1} parent=39 // pred_region
        %p324 = scmp.lt.s32.totalorder %s15, 1
        %s325 = scalar_select %p324, %s15, 1
        %s326 = smul.addr %s325, 2
        %s327 = smul.addr %s326, 8
        %s328 = scalar_lea.vmem %s3, %s327
      $region44: #{forward.1} parent=39 // pred_fallthru
        _
    $region40: #{forward.1} parent=5 // pred_fallthru
      _
  $region6: #{forward.1} parent=0 // loop_footer
    %s13 = sadd.s32 1, %s9
  $region7: #{forward.1} parent=0 // loop_footer_branch
    %8 = sbr.rel target = $region3
  $region8: #{forward.1} parent=0 // loop_exit
    _

</llo_original>
